<compile_context>
chip_gen: v5e
topology: v5e:2x2
jax: 0.10.0
libtpu: 0.0.40
codegen_flags: <defaults>
</compile_context>

<pallas_src>
from typing import NamedTuple

import jax
import jax.numpy as jnp
from jax import lax
from jax.experimental import pallas as pl
from jax.experimental.pallas import tpu as pltpu

EPS = 1e-5


def _round_up(n, m):
    return ((n + m - 1) // m) * m


def _cdiv(a, b):
    return -(-a // b)


def _num_tensorcores() -> int:
    """Best-effort TensorCores-per-chip (2 on v7x, 1 on v5e/v6e)."""
    try:
        info = pltpu.get_tpu_info()
        for attr in ("num_cores", "tensor_cores_per_chip", "num_tensorcores",
                     "cores_per_chip"):
            v = getattr(info, attr, None)
            if isinstance(v, int) and v > 0:
                return v
    except Exception:
        pass
    try:
        v = getattr(jax.devices()[0], "num_cores", None)
        if isinstance(v, int) and v > 0:
            return v
    except Exception:
        pass
    return 1


# ---------------------------------------------------------------------------
# Kernel
# ---------------------------------------------------------------------------
def permutation_kernel(x_ref, g1_ref, b1_ref, w1_ref, g2_ref, b2_ref, w2_ref,
                       o_ref):
    # x: (B, E_pad) f32, resident across all vocab tiles (constant block index).
    x = x_ref[...]
    inv_b = jnp.float32(1.0 / x.shape[0])

    # --- BatchNorm1d(emb_dim), training-mode batch stats (two-pass) ---
    mu0 = jnp.sum(x, axis=0, keepdims=True) * inv_b
    xc = x - mu0
    var0 = jnp.sum(xc * xc, axis=0, keepdims=True) * inv_b
    xn = xc * (lax.rsqrt(var0 + EPS) * g1_ref[...]) + b1_ref[...]

    # --- Linear(emb_dim, n_units, bias=False): bf16 operands, f32 acc ---
    h = jnp.dot(xn.astype(jnp.bfloat16), w1_ref[...],
                preferred_element_type=jnp.float32)

    # --- BatchNorm1d(n_units), training-mode batch stats (two-pass) ---
    mu1 = jnp.sum(h, axis=0, keepdims=True) * inv_b
    hc = h - mu1
    var1 = jnp.sum(hc * hc, axis=0, keepdims=True) * inv_b
    hn = hc * (lax.rsqrt(var1 + EPS) * g2_ref[...]) + b2_ref[...]

    # --- ReLU ---
    hr = jnp.maximum(hn, 0.0).astype(jnp.bfloat16)

    # --- Linear(n_units, vocab_size, bias=False): one vocab tile ---
    o_ref[...] = jnp.dot(hr, w2_ref[...],
                         preferred_element_type=jnp.float32).astype(o_ref.dtype)


# ---------------------------------------------------------------------------
# One-time parameter preparation (padding / casting cached across calls)
# ---------------------------------------------------------------------------
class PermutationParams(NamedTuple):
    g1p: jax.Array
    b1p: jax.Array
    w1p: jax.Array
    g2p: jax.Array
    b2p: jax.Array
    w2p: jax.Array
    emb_dim: int
    n_units: int
    vocab: int
    e_pad: int
    n_pad: int
    tile_v: int
    n_tiles: int
    v_pad: int


def prepare_permutation_params(g1, b1, w1, g2, b2, w2, *, tile_v=None,
                               num_cores=None):
    """Pad/cast parameters once. g1/b1: (emb_dim,)|(1,emb_dim); w1: (emb_dim,
    n_units); g2/b2: (n_units,)|(1,n_units); w2: (n_units, vocab)."""
    emb_dim, n_units = w1.shape
    vocab = w2.shape[1]

    f32, bf16 = jnp.float32, jnp.bfloat16
    e_pad = _round_up(emb_dim, 128)
    n_pad = _round_up(n_units, 128)
    v_pad128 = _round_up(vocab, 128)

    if num_cores is None:
        num_cores = _num_tensorcores()

    if tile_v is None:
        # Large tiles amortize per-step overhead and the prologue recompute;
        # dual-TC (v7x) gets half the max tile (64 MiB VMEM) and >=2 tiles so
        # both cores work under dimension_semantics=("parallel",).
        max_tile = 4096 if num_cores <= 1 else 2048
        n_tiles = max(num_cores, _cdiv(v_pad128, max_tile))
    else:
        tv = _round_up(min(tile_v, v_pad128), 128)
        n_tiles = _cdiv(v_pad128, tv)
    tile_v = _round_up(_cdiv(v_pad128, n_tiles), 128)
    v_pad = tile_v * n_tiles

    g1p = jnp.zeros((1, e_pad), f32).at[:, :emb_dim].set(
        g1.reshape(1, -1).astype(f32))
    b1p = jnp.zeros((1, e_pad), f32).at[:, :emb_dim].set(
        b1.reshape(1, -1).astype(f32))
    w1p = jnp.zeros((e_pad, n_pad), bf16).at[:emb_dim, :n_units].set(
        w1.astype(bf16))
    g2p = jnp.zeros((1, n_pad), f32).at[:, :n_units].set(
        g2.reshape(1, -1).astype(f32))
    b2p = jnp.zeros((1, n_pad), f32).at[:, :n_units].set(
        b2.reshape(1, -1).astype(f32))
    w2p = jnp.zeros((n_pad, v_pad), bf16).at[:n_units, :vocab].set(
        w2.astype(bf16))

    return PermutationParams(g1p, b1p, w1p, g2p, b2p, w2p,
                             emb_dim, n_units, vocab,
                             e_pad, n_pad, tile_v, n_tiles, v_pad)


# ---------------------------------------------------------------------------
# Forward
# ---------------------------------------------------------------------------
def permutation_forward(x, params: PermutationParams, *, trim_output=True):
    """x: (batch, emb_dim) -> logits (batch, vocab) (or (batch, v_pad) if
    trim_output=False, skipping the extra HBM copy of the logits)."""
    batch, emb_dim = x.shape
    assert emb_dim == params.emb_dim
    f32 = jnp.float32

    # Only x needs per-call padding (and only if emb_dim isn't lane-dense).
    if emb_dim == params.e_pad and x.dtype == f32:
        xp = x
    else:
        xp = jnp.zeros((batch, params.e_pad), f32).at[:, :emb_dim].set(
            x.astype(f32))

    e_pad, n_pad = params.e_pad, params.n_pad
    tile_v, n_tiles = params.tile_v, params.n_tiles

    # VMEM budget from the actual resident set (2x headroom for intermediates
    # and conservative double-buffering), capped at v7x's 64 MiB physical.
    resident = (batch * e_pad * 4                 # x (f32)
                + e_pad * n_pad * 2               # w1 (bf16)
                + 2 * (e_pad + n_pad) * 4         # gammas/betas
                + 2 * n_pad * tile_v * 2          # w2 tile, double-buffered
                + 2 * batch * tile_v * 4          # out tile, double-buffered
                + 4 * batch * max(e_pad, n_pad) * 4)  # activations
    vmem_limit = int(min(max(2 * resident + (8 << 20), 32 << 20), 64 << 20))

    out = pl.pallas_call(
        permutation_kernel,
        out_shape=jax.ShapeDtypeStruct((batch, params.v_pad), jnp.float32),
        grid_spec=pltpu.PrefetchScalarGridSpec(
            num_scalar_prefetch=0,
            grid=(n_tiles,),
            in_specs=[
                pl.BlockSpec((batch, e_pad), lambda j: (0, 0)),   # x (resident)
                pl.BlockSpec((1, e_pad), lambda j: (0, 0)),       # gamma1
                pl.BlockSpec((1, e_pad), lambda j: (0, 0)),       # beta1
                pl.BlockSpec((e_pad, n_pad), lambda j: (0, 0)),   # w1 (resident)
                pl.BlockSpec((1, n_pad), lambda j: (0, 0)),       # gamma2
                pl.BlockSpec((1, n_pad), lambda j: (0, 0)),       # beta2
                pl.BlockSpec((n_pad, tile_v), lambda j: (0, j)),  # w2 tile
            ],
            out_specs=pl.BlockSpec((batch, tile_v), lambda j: (0, j)),
        ),
        compiler_params=pltpu.CompilerParams(
            dimension_semantics=("parallel",),
            vmem_limit_bytes=vmem_limit,
        ),
    )(xp, params.g1p, params.b1p, params.w1p, params.g2p, params.b2p,
      params.w2p)

    if trim_output and params.v_pad != params.vocab:
        out = out[:, :params.vocab]
    return out


# ---------------------------------------------------------------------------
# References for the correctness check.
# ---------------------------------------------------------------------------
def permutation_reference_f32(x, g1, b1, w1, g2, b2, w2):
    """Pure f32 reference matching the PyTorch module (train mode)."""
    x = x.astype(jnp.float32)
    mu0 = jnp.mean(x, axis=0, keepdims=True)
    var0 = jnp.mean((x - mu0) ** 2, axis=0, keepdims=True)
    xn = (x - mu0) / jnp.sqrt(var0 + EPS) * g1 + b1
    h = xn @ w1
    mu1 = jnp.mean(h, axis=0, keepdims=True)
    var1 = jnp.mean((h - mu1) ** 2, axis=0, keepdims=True)
    hn = (h - mu1) / jnp.sqrt(var1 + EPS) * g2 + b2
    return jnp.maximum(hn, 0.0) @ w2


def permutation_reference_mixed(x, g1, b1, w1, g2, b2, w2):
    """Reference mimicking the kernel's precision path (bf16 MXU operands,
    f32 accumulation, f32 two-pass BN math) for a tight numerical check."""
    bf16 = jnp.bfloat16
    x = x.astype(jnp.float32)
    mu0 = jnp.mean(x, axis=0, keepdims=True)
    xc = x - mu0
    var0 = jnp.mean(xc * xc, axis=0, keepdims=True)
    xn = xc * (lax.rsqrt(var0 + EPS) * g1) + b1
    h = jnp.dot(xn.astype(bf16), w1.astype(bf16),
                preferred_element_type=jnp.float32)
    mu1 = jnp.mean(h, axis=0, keepdims=True)
    hc = h - mu1
    var1 = jnp.mean(hc * hc, axis=0, keepdims=True)
    hn = hc * (lax.rsqrt(var1 + EPS) * g2) + b2
    hr = jnp.maximum(hn, 0.0).astype(bf16)
    return jnp.dot(hr, w2.astype(bf16), preferred_element_type=jnp.float32)


if __name__ == "__main__":
    # Small shapes consistent with the module's constructor.
    batch, emb_dim, n_units, vocab_size = 8, 32, 64, 1000

    key = jax.random.PRNGKey(0)
    kx, kw1, kw2, kg1, kb1, kg2, kb2 = jax.random.split(key, 7)

    x = jax.random.normal(kx, (batch, emb_dim), dtype=jnp.float32)

    # Deterministic synthetic parameters (no checkpoint load).
    w1 = jax.random.normal(kw1, (emb_dim, n_units), dtype=jnp.float32) * 0.1
    w2 = jax.random.normal(kw2, (n_units, vocab_size), dtype=jnp.float32) * 0.1
    g1 = 1.0 + 0.05 * jax.random.normal(kg1, (1, emb_dim), dtype=jnp.float32)
    b1 = 0.05 * jax.random.normal(kb1, (1, emb_dim), dtype=jnp.float32)
    g2 = 1.0 + 0.05 * jax.random.normal(kg2, (1, n_units), dtype=jnp.float32)
    b2 = 0.05 * jax.random.normal(kb2, (1, n_units), dtype=jnp.float32)

    # One-time parameter preparation (cached padded/bf16 weights).
    params = prepare_permutation_params(g1, b1, w1, g2, b2, w2)

    out = permutation_forward(x, params)   # trim_output=True -> (batch, vocab)
    out = jax.block_until_ready(out)
    assert out.shape == (batch, vocab_size)

    # Tight check against a reference with the same mixed-precision path.
    ref_mixed = permutation_reference_mixed(x, g1, b1, w1, g2, b2, w2)
    err_mixed = float(jnp.max(jnp.abs(out - ref_mixed)))
    assert jnp.allclose(out, ref_mixed, atol=5e-3, rtol=5e-3), err_mixed

    # Looser check against the pure-f32 module semantics (bf16 MXU operands
    # introduce ~1e-2-scale differences at these magnitudes).
    ref_f32 = permutation_reference_f32(x, g1, b1, w1, g2, b2, w2)
    err_f32 = float(jnp.max(jnp.abs(out - ref_f32)))
    assert jnp.allclose(out, ref_f32, atol=5e-2, rtol=5e-2), err_f32

    print("KERNEL_OK")
</pallas_src>

<mosaic_0001>
module attributes {stable_mosaic.version = 11 : i64} {
  func.func @permutation_kernel(%arg0: i32, %arg1: memref<8x128xf32, #tpu.memory_space<vmem>>, %arg2: memref<1x128xf32, #tpu.memory_space<vmem>>, %arg3: memref<1x128xf32, #tpu.memory_space<vmem>>, %arg4: memref<128x128xbf16, #tpu.memory_space<vmem>>, %arg5: memref<1x128xf32, #tpu.memory_space<vmem>>, %arg6: memref<1x128xf32, #tpu.memory_space<vmem>>, %arg7: memref<128x1024xbf16, #tpu.memory_space<vmem>>, %arg8: memref<8x1024xf32, #tpu.memory_space<vmem>>) attributes {dimension_semantics = [#tpu.dimension_semantics<parallel>], iteration_bounds = array<i64: 1>, scalar_prefetch = 0 : i64, scratch_operands = 0 : i64, tpu.core_type = #tpu.core_type<tc>, window_params = [{pipeline_mode = #tpu.pipeline_mode<synchronous>, transform_indices = @transform_0, window_bounds = array<i64: 8, 128>}, {pipeline_mode = #tpu.pipeline_mode<synchronous>, transform_indices = @transform_1, window_bounds = array<i64: 1, 128>}, {pipeline_mode = #tpu.pipeline_mode<synchronous>, transform_indices = @transform_2, window_bounds = array<i64: 1, 128>}, {pipeline_mode = #tpu.pipeline_mode<synchronous>, transform_indices = @transform_3, window_bounds = array<i64: 128, 128>}, {pipeline_mode = #tpu.pipeline_mode<synchronous>, transform_indices = @transform_4, window_bounds = array<i64: 1, 128>}, {pipeline_mode = #tpu.pipeline_mode<synchronous>, transform_indices = @transform_5, window_bounds = array<i64: 1, 128>}, {transform_indices = @transform_6, window_bounds = array<i64: 128, 1024>}, {transform_indices = @transform_7, window_bounds = array<i64: 8, 1024>}]} {
    %c0 = arith.constant 0 : index
    %c0_0 = arith.constant 0 : index
    %0 = vector.load %arg1[%c0, %c0_0] : memref<8x128xf32, #tpu.memory_space<vmem>>, vector<8x128xf32>
    %cst = arith.constant dense<0.000000e+00> : vector<128xf32>
    %1 = vector.multi_reduction <add>, %0, %cst [0] : vector<8x128xf32> to vector<128xf32>
    %2 = vector.shape_cast %1 : vector<128xf32> to vector<1x128xf32>
    %cst_1 = arith.constant 1.250000e-01 : f32
    %3 = vector.broadcast %cst_1 : f32 to vector<1x128xf32>
    %4 = arith.mulf %2, %3 : vector<1x128xf32>
    %5 = vector.broadcast %4 : vector<1x128xf32> to vector<8x128xf32>
    %6 = arith.subf %0, %5 : vector<8x128xf32>
    %7 = arith.mulf %6, %6 : vector<8x128xf32>
    %cst_2 = arith.constant dense<0.000000e+00> : vector<128xf32>
    %8 = vector.multi_reduction <add>, %7, %cst_2 [0] : vector<8x128xf32> to vector<128xf32>
    %9 = vector.shape_cast %8 : vector<128xf32> to vector<1x128xf32>
    %cst_3 = arith.constant 1.250000e-01 : f32
    %10 = vector.broadcast %cst_3 : f32 to vector<1x128xf32>
    %11 = arith.mulf %9, %10 : vector<1x128xf32>
    %cst_4 = arith.constant 9.99999974E-6 : f32
    %12 = vector.broadcast %cst_4 : f32 to vector<1x128xf32>
    %13 = arith.addf %11, %12 : vector<1x128xf32>
    %14 = math.rsqrt %13 : vector<1x128xf32>
    %c0_5 = arith.constant 0 : index
    %c0_6 = arith.constant 0 : index
    %15 = vector.load %arg2[%c0_5, %c0_6] : memref<1x128xf32, #tpu.memory_space<vmem>>, vector<1x128xf32>
    %16 = arith.mulf %14, %15 : vector<1x128xf32>
    %17 = vector.broadcast %16 : vector<1x128xf32> to vector<8x128xf32>
    %18 = arith.mulf %6, %17 : vector<8x128xf32>
    %c0_7 = arith.constant 0 : index
    %c0_8 = arith.constant 0 : index
    %19 = vector.load %arg3[%c0_7, %c0_8] : memref<1x128xf32, #tpu.memory_space<vmem>>, vector<1x128xf32>
    %20 = vector.broadcast %19 : vector<1x128xf32> to vector<8x128xf32>
    %21 = arith.addf %18, %20 : vector<8x128xf32>
    %22 = arith.truncf %21 : vector<8x128xf32> to vector<8x128xbf16>
    %c0_9 = arith.constant 0 : index
    %c0_10 = arith.constant 0 : index
    %23 = vector.load %arg4[%c0_9, %c0_10] : memref<128x128xbf16, #tpu.memory_space<vmem>>, vector<128x128xbf16>
    %cst_11 = arith.constant dense<0.000000e+00> : vector<8x128xf32>
    %24 = tpu.matmul %22, %23, %cst_11 {dimension_numbers = #tpu.dot_dimension_numbers<[1], [0], [0], [1], [0, 0, 1, 1], [], []>} : vector<8x128xbf16>, vector<128x128xbf16>, vector<8x128xf32> -> vector<8x128xf32>
    %cst_12 = arith.constant dense<0.000000e+00> : vector<128xf32>
    %25 = vector.multi_reduction <add>, %24, %cst_12 [0] : vector<8x128xf32> to vector<128xf32>
    %26 = vector.shape_cast %25 : vector<128xf32> to vector<1x128xf32>
    %cst_13 = arith.constant 1.250000e-01 : f32
    %27 = vector.broadcast %cst_13 : f32 to vector<1x128xf32>
    %28 = arith.mulf %26, %27 : vector<1x128xf32>
    %29 = vector.broadcast %28 : vector<1x128xf32> to vector<8x128xf32>
    %30 = arith.subf %24, %29 : vector<8x128xf32>
    %31 = arith.mulf %30, %30 : vector<8x128xf32>
    %cst_14 = arith.constant dense<0.000000e+00> : vector<128xf32>
    %32 = vector.multi_reduction <add>, %31, %cst_14 [0] : vector<8x128xf32> to vector<128xf32>
    %33 = vector.shape_cast %32 : vector<128xf32> to vector<1x128xf32>
    %cst_15 = arith.constant 1.250000e-01 : f32
    %34 = vector.broadcast %cst_15 : f32 to vector<1x128xf32>
    %35 = arith.mulf %33, %34 : vector<1x128xf32>
    %cst_16 = arith.constant 9.99999974E-6 : f32
    %36 = vector.broadcast %cst_16 : f32 to vector<1x128xf32>
    %37 = arith.addf %35, %36 : vector<1x128xf32>
    %38 = math.rsqrt %37 : vector<1x128xf32>
    %c0_17 = arith.constant 0 : index
    %c0_18 = arith.constant 0 : index
    %39 = vector.load %arg5[%c0_17, %c0_18] : memref<1x128xf32, #tpu.memory_space<vmem>>, vector<1x128xf32>
    %40 = arith.mulf %38, %39 : vector<1x128xf32>
    %41 = vector.broadcast %40 : vector<1x128xf32> to vector<8x128xf32>
    %42 = arith.mulf %30, %41 : vector<8x128xf32>
    %c0_19 = arith.constant 0 : index
    %c0_20 = arith.constant 0 : index
    %43 = vector.load %arg6[%c0_19, %c0_20] : memref<1x128xf32, #tpu.memory_space<vmem>>, vector<1x128xf32>
    %44 = vector.broadcast %43 : vector<1x128xf32> to vector<8x128xf32>
    %45 = arith.addf %42, %44 : vector<8x128xf32>
    %cst_21 = arith.constant 0.000000e+00 : f32
    %46 = vector.broadcast %cst_21 : f32 to vector<8x128xf32>
    %47 = arith.maximumf %45, %46 : vector<8x128xf32>
    %48 = arith.truncf %47 : vector<8x128xf32> to vector<8x128xbf16>
    %c0_22 = arith.constant 0 : index
    %c0_23 = arith.constant 0 : index
    %49 = vector.load %arg7[%c0_22, %c0_23] : memref<128x1024xbf16, #tpu.memory_space<vmem>>, vector<128x1024xbf16>
    %cst_24 = arith.constant dense<0.000000e+00> : vector<8x1024xf32>
    %50 = tpu.matmul %48, %49, %cst_24 {dimension_numbers = #tpu.dot_dimension_numbers<[1], [0], [0], [1], [0, 0, 1, 1], [], []>} : vector<8x128xbf16>, vector<128x1024xbf16>, vector<8x1024xf32> -> vector<8x1024xf32>
    %c0_25 = arith.constant 0 : index
    %c0_26 = arith.constant 0 : index
    %51 = vector.load %arg8[%c0_25, %c0_26] : memref<8x1024xf32, #tpu.memory_space<vmem>>, vector<8x1024xf32>
    tpu.vector_store %arg8[%c0_25, %c0_26], %50 {strides = array<i32>} : memref<8x1024xf32, #tpu.memory_space<vmem>>, vector<8x1024xf32>,
    return
  }
  func.func @transform_0(%arg0: i32) -> (i32, i32) {
    %c0_i32 = arith.constant 0 : i32
    %c0_i32_0 = arith.constant 0 : i32
    %c0_i32_1 = arith.constant 0 : i32
    return %c0_i32, %c0_i32_0 : i32, i32
  }
  func.func @transform_1(%arg0: i32) -> (i32, i32) {
    %c0_i32 = arith.constant 0 : i32
    %c0_i32_0 = arith.constant 0 : i32
    %c0_i32_1 = arith.constant 0 : i32
    return %c0_i32, %c0_i32_0 : i32, i32
  }
  func.func @transform_2(%arg0: i32) -> (i32, i32) {
    %c0_i32 = arith.constant 0 : i32
    %c0_i32_0 = arith.constant 0 : i32
    %c0_i32_1 = arith.constant 0 : i32
    return %c0_i32, %c0_i32_0 : i32, i32
  }
  func.func @transform_3(%arg0: i32) -> (i32, i32) {
    %c0_i32 = arith.constant 0 : i32
    %c0_i32_0 = arith.constant 0 : i32
    %c0_i32_1 = arith.constant 0 : i32
    return %c0_i32, %c0_i32_0 : i32, i32
  }
  func.func @transform_4(%arg0: i32) -> (i32, i32) {
    %c0_i32 = arith.constant 0 : i32
    %c0_i32_0 = arith.constant 0 : i32
    %c0_i32_1 = arith.constant 0 : i32
    return %c0_i32, %c0_i32_0 : i32, i32
  }
  func.func @transform_5(%arg0: i32) -> (i32, i32) {
    %c0_i32 = arith.constant 0 : i32
    %c0_i32_0 = arith.constant 0 : i32
    %c0_i32_1 = arith.constant 0 : i32
    return %c0_i32, %c0_i32_0 : i32, i32
  }
  func.func @transform_6(%arg0: i32) -> (i32, i32) {
    %c0_i32 = arith.constant 0 : i32
    %c0_i32_0 = arith.constant 0 : i32
    return %c0_i32, %arg0 : i32, i32
  }
  func.func @transform_7(%arg0: i32) -> (i32, i32) {
    %c0_i32 = arith.constant 0 : i32
    %c0_i32_0 = arith.constant 0 : i32
    return %c0_i32, %arg0 : i32, i32
  }
}

</mosaic_0001>

<llo_original>
// kernel: tpu_custom_call.1
$region0: #{tpu_custom_call.1}
  #allocation0 [shape = 'u32[]', space=smem, size = 0x4, offset = 0x4, fixed_abs, tag = 'smem constant byte address 0x4 - core index']
  #allocation1 [shape = 'u32[72,128]{1,0:T(1,128)}', space=vmem, size = 0x9000, scoped, tag = 'internal scratch']
  %s0 = inlined_call_operand.hbm [shape: f32[8,128], index: 0, kind: input, shape index: {}]
  %s1 = inlined_call_operand.hbm [shape: f32[1,128], index: 1, kind: input, shape index: {}]
  %s2 = inlined_call_operand.vmem [shape: f32[1,128], index: 2, kind: input, shape index: {}]
  %s3 = inlined_call_operand.hbm [shape: bf16[128,128], index: 3, kind: input, shape index: {}]
  %s4 = inlined_call_operand.vmem [shape: f32[1,128], index: 4, kind: input, shape index: {}]
  %s5 = inlined_call_operand.vmem [shape: f32[1,128], index: 5, kind: input, shape index: {}]
  %s6 = inlined_call_operand.hbm [shape: bf16[128,1024], index: 6, kind: input, shape index: {}]
  %s7 = inlined_call_operand.hbm [shape: f32[8,1024], index: 7, kind: output, shape index: {}]
  %s8 = sld [smem:[#allocation0]]
  $region54: #{tpu_custom_call.1} parent=0
    _
  %s10 = ssub.s32 1, %s8
  %s11 = scalar_select 0, %s10, %s8
  $region1: #{tpu_custom_call.1} parent=0
    #allocation2 [shape = 'u8[4096]{0}', space=vmem, size = 0x1000, scoped, tag = 'input window, operand 0, single buffered']
    #allocation3 [shape = 's32[1]{0}', space=sflag, size = 0x4, scoped, tag = 'scoped memory for tpu_custom_call.1']
    #allocation4 [shape = 's32[1]{0}', space=sflag, size = 0x4, scoped, tag = 'scoped memory for tpu_custom_call.1']
    #allocation5 [shape = 'u8[512]{0}', space=vmem, size = 0x400, scoped, tag = 'input window, operand 1, single buffered']
    #allocation6 [shape = 's32[1]{0}', space=sflag, size = 0x4, scoped, tag = 'scoped memory for tpu_custom_call.1']
    #allocation7 [shape = 'u8[32768]{0}', space=vmem, size = 0x8000, scoped, tag = 'input window, operand 3, single buffered']
    #allocation8 [shape = 'u8[262144]{0}', space=vmem, size = 0x40000, scoped, tag = 'input window, operand 6, single buffered']
    #allocation9 [shape = 's32[1]{0}', space=sflag, size = 0x4, scoped, tag = 'scoped memory for tpu_custom_call.1']
    #allocation10 [shape = 'u8[32768]{0}', space=vmem, size = 0x8000, scoped, tag = 'output window, operand 0, single buffered']
    %12 = vsyncpa [#allocation3], 0
    %13 = vsyncpa [#allocation6], 0
    %14 = vsyncpa [#allocation9], 0
    %15 = vsyncpa [#allocation4], 0
    // Predicated region
    $region2: #{tpu_custom_call.1} parent=1 // pred_check
      _
    $region3: #{tpu_custom_call.1} parent=1 // pred_check_branch
      %17 = sbr.rel (0) target = $region5
    $region4: #{tpu_custom_call.1} parent=1 // pred_region
      %19 = vsyncadd [#allocation3], 0
      %s21 = sshll.u32 %s0, 4
      %s22 = int_to_ptr.hbm [resolvable:$true] %s21
      %s23 = sshll.u32 [#allocation2], 4
      %s24 = int_to_ptr.vmem [resolvable:$true] %s23
      %26 = dma.hbm_to_vmem [thread:$0]  %s22, 128, %s24, [#allocation3]
    $region5: #{tpu_custom_call.1} parent=1 // pred_fallthru
      _
    // Predicated region
    $region6: #{tpu_custom_call.1} parent=1 // pred_check
      _
    $region7: #{tpu_custom_call.1} parent=1 // pred_check_branch
      %28 = sbr.rel (0) target = $region9
    $region8: #{tpu_custom_call.1} parent=1 // pred_region
      %30 = vsyncadd [#allocation6], 0
      %s32 = sshll.u32 %s1, 4
      %s33 = int_to_ptr.hbm [resolvable:$true] %s32
      %s34 = sshll.u32 [#allocation5], 4
      %s35 = int_to_ptr.vmem [resolvable:$true] %s34
      %37 = dma.hbm_to_vmem [thread:$0]  %s33, 16, %s35, [#allocation6]
    $region9: #{tpu_custom_call.1} parent=1 // pred_fallthru
      _
    // Predicated region
    $region10: #{tpu_custom_call.1} parent=1 // pred_check
      _
    $region11: #{tpu_custom_call.1} parent=1 // pred_check_branch
      %39 = sbr.rel (0) target = $region13
    $region12: #{tpu_custom_call.1} parent=1 // pred_region
      _
    $region13: #{tpu_custom_call.1} parent=1 // pred_fallthru
      _
    // Predicated region
    $region14: #{tpu_custom_call.1} parent=1 // pred_check
      _
    $region15: #{tpu_custom_call.1} parent=1 // pred_check_branch
      %41 = sbr.rel (0) target = $region17
    $region16: #{tpu_custom_call.1} parent=1 // pred_region
      %43 = vsyncadd [#allocation6], 0
      %s44 = sshll.u32 %s3, 4
      %s45 = int_to_ptr.hbm [resolvable:$true] %s44
      %s46 = sshll.u32 [#allocation7], 4
      %s47 = int_to_ptr.vmem [resolvable:$true] %s46
      %52 = dma.hbm_to_vmem [thread:$0]  %s45, 1024, %s47, [#allocation6], 64, 64, 4
    $region17: #{tpu_custom_call.1} parent=1 // pred_fallthru
      _
    // Predicated region
    $region18: #{tpu_custom_call.1} parent=1 // pred_check
      _
    $region19: #{tpu_custom_call.1} parent=1 // pred_check_branch
      %54 = sbr.rel (0) target = $region21
    $region20: #{tpu_custom_call.1} parent=1 // pred_region
      _
    $region21: #{tpu_custom_call.1} parent=1 // pred_fallthru
      _
    // Predicated region
    $region22: #{tpu_custom_call.1} parent=1 // pred_check
      _
    $region23: #{tpu_custom_call.1} parent=1 // pred_check_branch
      %56 = sbr.rel (0) target = $region25
    $region24: #{tpu_custom_call.1} parent=1 // pred_region
      _
    $region25: #{tpu_custom_call.1} parent=1 // pred_fallthru
      _
    // Predicated region
    $region26: #{tpu_custom_call.1} parent=1 // pred_check
      _
    $region27: #{tpu_custom_call.1} parent=1 // pred_check_branch
      %58 = sbr.rel (0) target = $region29
    $region28: #{tpu_custom_call.1} parent=1 // pred_region
      %60 = vsyncadd [#allocation9], 0
      %s61 = sshll.u32 %s6, 4
      %s62 = int_to_ptr.hbm [resolvable:$true] %s61
      %s63 = sshll.u32 [#allocation8], 4
      %s64 = int_to_ptr.vmem [resolvable:$true] %s63
      %69 = dma.hbm_to_vmem [thread:$0]  %s62, 8192, %s64, [#allocation9], 512, 512, 32
    $region29: #{tpu_custom_call.1} parent=1 // pred_fallthru
      _
    // Predicated region
    $region30: #{tpu_custom_call.1} parent=1 // pred_check
      _
    $region31: #{tpu_custom_call.1} parent=1 // pred_check_branch
      %71 = sbr.rel (0) target = $region33
    $region32: #{tpu_custom_call.1} parent=1 // pred_region
      %73 = dma.done [#allocation3], 128
    $region33: #{tpu_custom_call.1} parent=1 // pred_fallthru
      _
    // Predicated region
    $region34: #{tpu_custom_call.1} parent=1 // pred_check
      _
    $region35: #{tpu_custom_call.1} parent=1 // pred_check_branch
      %75 = sbr.rel (0) target = $region37
    $region36: #{tpu_custom_call.1} parent=1 // pred_region
      %77 = dma.done [#allocation6], 16
    $region37: #{tpu_custom_call.1} parent=1 // pred_fallthru
      _
    // Predicated region
    $region38: #{tpu_custom_call.1} parent=1 // pred_check
      _
    $region39: #{tpu_custom_call.1} parent=1 // pred_check_branch
      %79 = sbr.rel (0) target = $region41
    $region40: #{tpu_custom_call.1} parent=1 // pred_region
      %81 = dma.done [#allocation6], 1024
    $region41: #{tpu_custom_call.1} parent=1 // pred_fallthru
      _
    // Predicated region
    $region42: #{tpu_custom_call.1} parent=1 // pred_check
      _
    $region43: #{tpu_custom_call.1} parent=1 // pred_check_branch
      %83 = sbr.rel (0) target = $region45
    $region44: #{tpu_custom_call.1} parent=1 // pred_region
      %85 = dma.done [#allocation9], 8192
    $region45: #{tpu_custom_call.1} parent=1 // pred_fallthru
      _
    %v86 = vld [vmem:[#allocation2] sm:$0xff]
    %v87 = vrot.slane %v86, 4
    %v88 = vadd.f32 %v86, %v87
    %v89 = vrot.slane %v88, 2
    %v90 = vadd.f32 %v88, %v89
    %v91 = vrot.slane %v90, 1
    %v92 = vadd.f32 %v90, %v91
    %v93 = vmul.f32 %v92, 0.125
    %v94 = vsub.f32 %v86, %v93
    %v95 = vmul.f32 %v94, %v94
    %v96 = vrot.slane %v95, 4
    %v97 = vadd.f32 %v95, %v96
    %v98 = vrot.slane %v97, 2
    %v99 = vadd.f32 %v97, %v98
    %v100 = vrot.slane %v99, 1
    %v101 = vadd.f32 %v99, %v100
    %v102 = vmul.f32 %v101, 0.125
    %v103 = vadd.f32 %v102, 1e-05
    %v104 = vrsqrt.pop %v103
    %v105 = vmul.f32 %v104, %v103
    %v106 = vmul.f32 %v105, %v104
    %v107 = vmul.f32 0.5, %v106
    %v108 = vsub.f32 1.5, %v107
    %v109 = vmul.f32 %v104, %v108
    %vm110 = vweird.f32 %v103
    %vm111 = vweird.f32 %v104
    %vm112 = vmor %vm110, %vm111
    %v113 = vsel %vm112, %v104, %v109
    %v114 = vld [vmem:[#allocation5] sm:$0x1]
    %v115 = vmul.f32 %v113, %v114
    %v116 = vperm.slane %v115, 0
    %v117 = vmul.f32 %v94, %v116
    %v118 = vld [vmem:[%s2] sm:$0x1]
    %v120 = vperm.slane %v118, 0
    %v122 = vadd.f32 %v117, %v120
    %v123 = vpack.c.bf16 %v122, %v122
    %v124 = vld [vmem:[#allocation7] sm:$0xf]
    %v125 = vld [vmem:[#allocation7 + $0x4] sm:$0xf]
    %v126 = vld [vmem:[#allocation7 + $0x8] sm:$0xf]
    %v127 = vld [vmem:[#allocation7 + $0xc] sm:$0xf]
    %v128 = vld [vmem:[#allocation7 + $0x10] sm:$0xf]
    %v129 = vld [vmem:[#allocation7 + $0x14] sm:$0xf]
    %v130 = vld [vmem:[#allocation7 + $0x18] sm:$0xf]
    %v131 = vld [vmem:[#allocation7 + $0x1c] sm:$0xf]
    %v132 = vld [vmem:[#allocation7 + $0x20] sm:$0xf]
    %v133 = vld [vmem:[#allocation7 + $0x24] sm:$0xf]
    %v134 = vld [vmem:[#allocation7 + $0x28] sm:$0xf]
    %v135 = vld [vmem:[#allocation7 + $0x2c] sm:$0xf]
    %v136 = vld [vmem:[#allocation7 + $0x30] sm:$0xf]
    %v137 = vld [vmem:[#allocation7 + $0x34] sm:$0xf]
    %v138 = vld [vmem:[#allocation7 + $0x38] sm:$0xf]
    %v139 = vld [vmem:[#allocation7 + $0x3c] sm:$0xf]
    %v156 = vunpack.c.l.b16 %v124
    %v157 = vunpack.c.l.b16 %v125
    %v158 = vunpack.c.l.b16 %v126
    %v159 = vunpack.c.l.b16 %v127
    %v160 = vunpack.c.l.b16 %v128
    %v161 = vunpack.c.l.b16 %v129
    %v162 = vunpack.c.l.b16 %v130
    %v163 = vunpack.c.l.b16 %v131
    %v164 = vunpack.c.l.b16 %v132
    %v165 = vunpack.c.l.b16 %v133
    %v166 = vunpack.c.l.b16 %v134
    %v167 = vunpack.c.l.b16 %v135
    %v168 = vunpack.c.l.b16 %v136
    %v169 = vunpack.c.l.b16 %v137
    %v170 = vunpack.c.l.b16 %v138
    %v171 = vunpack.c.l.b16 %v139
    %v172 = vpack.c.b16 %v157, %v156
    %v173 = vpack.c.b16 %v159, %v158
    %v174 = vpack.c.b16 %v161, %v160
    %v175 = vpack.c.b16 %v163, %v162
    %v176 = vpack.c.b16 %v165, %v164
    %v177 = vpack.c.b16 %v167, %v166
    %v178 = vpack.c.b16 %v169, %v168
    %v179 = vpack.c.b16 %v171, %v170
    %188 = vmatpush.bf16.msra.mxu0 %v179
    %189 = vmatpush.bf16.msra.mxu0 %v178
    %190 = vmatpush.bf16.msra.mxu0 %v177
    %191 = vmatpush.bf16.msra.mxu0 %v176
    %192 = vmatpush.bf16.msra.mxu0 %v175
    %193 = vmatpush.bf16.msra.mxu0 %v174
    %194 = vmatpush.bf16.msra.mxu0 %v173
    %195 = vmatpush.bf16.msra.mxu0 %v172
    %196 = vmatmul.bf16.gmra.mxu0 %v123
    %v197 = vpop.f32.mrf.mxu0
    %v198 = vadd.f32 0.0, %v197
    %v199 = vpop.f32.mrf.mxu0
    %200 = vdwg.mxu0
    %v201 = vrot.slane %v198, 4
    %v202 = vadd.f32 %v198, %v201
    %v203 = vrot.slane %v202, 2
    %v204 = vadd.f32 %v202, %v203
    %v205 = vrot.slane %v204, 1
    %v206 = vadd.f32 %v204, %v205
    %v207 = vmul.f32 %v206, 0.125
    %v208 = vsub.f32 %v198, %v207
    %v209 = vmul.f32 %v208, %v208
    %v210 = vrot.slane %v209, 4
    %v211 = vadd.f32 %v209, %v210
    %v212 = vrot.slane %v211, 2
    %v213 = vadd.f32 %v211, %v212
    %v214 = vrot.slane %v213, 1
    %v215 = vadd.f32 %v213, %v214
    %v216 = vmul.f32 %v215, 0.125
    %v217 = vadd.f32 %v216, 1e-05
    %v218 = vrsqrt.pop %v217
    %v219 = vmul.f32 %v218, %v217
    %v220 = vmul.f32 %v219, %v218
    %v221 = vmul.f32 0.5, %v220
    %v222 = vsub.f32 1.5, %v221
    %v223 = vmul.f32 %v218, %v222
    %vm224 = vweird.f32 %v217
    %vm225 = vweird.f32 %v218
    %vm226 = vmor %vm224, %vm225
    %v227 = vsel %vm226, %v218, %v223
    %v228 = vld [vmem:[%s4] sm:$0x1]
    %v229 = vmul.f32 %v227, %v228
    %v230 = vperm.slane %v229, 0
    %v231 = vmul.f32 %v208, %v230
    %v232 = vld [vmem:[%s5] sm:$0x1]
    %v234 = vperm.slane %v232, 0
    %v236 = vadd.f32 %v231, %v234
    %v237 = vmax.f32 %v236, 0.0
    %v238 = vpack.c.bf16 %v237, %v237
    %v239 = vld [vmem:[#allocation8] sm:$0xff]
    %v240 = vld [vmem:[#allocation8 + $0x8] sm:$0xff]
    %v241 = vld [vmem:[#allocation8 + $0x10] sm:$0xff]
    %v242 = vld [vmem:[#allocation8 + $0x18] sm:$0xff]
    %v243 = vld [vmem:[#allocation8 + $0x20] sm:$0xff]
    %v244 = vld [vmem:[#allocation8 + $0x28] sm:$0xff]
    %v245 = vld [vmem:[#allocation8 + $0x30] sm:$0xff]
    %v246 = vld [vmem:[#allocation8 + $0x38] sm:$0xff]
    %v247 = vld [vmem:[#allocation8 + $0x40] sm:$0xff]
    %v248 = vld [vmem:[#allocation8 + $0x48] sm:$0xff]
    %v249 = vld [vmem:[#allocation8 + $0x50] sm:$0xff]
    %v250 = vld [vmem:[#allocation8 + $0x58] sm:$0xff]
    %v251 = vld [vmem:[#allocation8 + $0x60] sm:$0xff]
    %v252 = vld [vmem:[#allocation8 + $0x68] sm:$0xff]
    %v253 = vld [vmem:[#allocation8 + $0x70] sm:$0xff]
    %v254 = vld [vmem:[#allocation8 + $0x78] sm:$0xff]
    %v255 = vld [vmem:[#allocation8 + $0x80] sm:$0xff]
    %v256 = vld [vmem:[#allocation8 + $0x88] sm:$0xff]
    %v257 = vld [vmem:[#allocation8 + $0x90] sm:$0xff]
    %v258 = vld [vmem:[#allocation8 + $0x98] sm:$0xff]
    %v259 = vld [vmem:[#allocation8 + $0xa0] sm:$0xff]
    %v260 = vld [vmem:[#allocation8 + $0xa8] sm:$0xff]
    %v261 = vld [vmem:[#allocation8 + $0xb0] sm:$0xff]
    %v262 = vld [vmem:[#allocation8 + $0xb8] sm:$0xff]
    %v263 = vld [vmem:[#allocation8 + $0xc0] sm:$0xff]
    %v264 = vld [vmem:[#allocation8 + $0xc8] sm:$0xff]
    %v265 = vld [vmem:[#allocation8 + $0xd0] sm:$0xff]
    %v266 = vld [vmem:[#allocation8 + $0xd8] sm:$0xff]
    %v267 = vld [vmem:[#allocation8 + $0xe0] sm:$0xff]
    %v268 = vld [vmem:[#allocation8 + $0xe8] sm:$0xff]
    %v269 = vld [vmem:[#allocation8 + $0xf0] sm:$0xff]
    %v270 = vld [vmem:[#allocation8 + $0xf8] sm:$0xff]
    %v271 = vld [vmem:[#allocation8 + $0x100] sm:$0xff]
    %v272 = vld [vmem:[#allocation8 + $0x108] sm:$0xff]
    %v273 = vld [vmem:[#allocation8 + $0x110] sm:$0xff]
    %v274 = vld [vmem:[#allocation8 + $0x118] sm:$0xff]
    %v275 = vld [vmem:[#allocation8 + $0x120] sm:$0xff]
    %v276 = vld [vmem:[#allocation8 + $0x128] sm:$0xff]
    %v277 = vld [vmem:[#allocation8 + $0x130] sm:$0xff]
    %v278 = vld [vmem:[#allocation8 + $0x138] sm:$0xff]
    %v279 = vld [vmem:[#allocation8 + $0x140] sm:$0xff]
    %v280 = vld [vmem:[#allocation8 + $0x148] sm:$0xff]
    %v281 = vld [vmem:[#allocation8 + $0x150] sm:$0xff]
    %v282 = vld [vmem:[#allocation8 + $0x158] sm:$0xff]
    %v283 = vld [vmem:[#allocation8 + $0x160] sm:$0xff]
    %v284 = vld [vmem:[#allocation8 + $0x168] sm:$0xff]
    %v285 = vld [vmem:[#allocation8 + $0x170] sm:$0xff]
    %v286 = vld [vmem:[#allocation8 + $0x178] sm:$0xff]
    %v287 = vld [vmem:[#allocation8 + $0x180] sm:$0xff]
    %v288 = vld [vmem:[#allocation8 + $0x188] sm:$0xff]
    %v289 = vld [vmem:[#allocation8 + $0x190] sm:$0xff]
    %v290 = vld [vmem:[#allocation8 + $0x198] sm:$0xff]
    %v291 = vld [vmem:[#allocation8 + $0x1a0] sm:$0xff]
    %v292 = vld [vmem:[#allocation8 + $0x1a8] sm:$0xff]
    %v293 = vld [vmem:[#allocation8 + $0x1b0] sm:$0xff]
    %v294 = vld [vmem:[#allocation8 + $0x1b8] sm:$0xff]
    %v295 = vld [vmem:[#allocation8 + $0x1c0] sm:$0xff]
    %v296 = vld [vmem:[#allocation8 + $0x1c8] sm:$0xff]
    %v297 = vld [vmem:[#allocation8 + $0x1d0] sm:$0xff]
    %v298 = vld [vmem:[#allocation8 + $0x1d8] sm:$0xff]
    %v299 = vld [vmem:[#allocation8 + $0x1e0] sm:$0xff]
    %v300 = vld [vmem:[#allocation8 + $0x1e8] sm:$0xff]
    %v301 = vld [vmem:[#allocation8 + $0x1f0] sm:$0xff]
    %v302 = vld [vmem:[#allocation8 + $0x1f8] sm:$0xff]
    %v367 = vunpack.c.l.b16 %v239
    %v368 = vunpack.c.h.b16 %v239
    %v369 = vunpack.c.l.b16 %v240
    %v370 = vunpack.c.h.b16 %v240
    %v371 = vunpack.c.l.b16 %v241
    %v372 = vunpack.c.h.b16 %v241
    %v373 = vunpack.c.l.b16 %v242
    %v374 = vunpack.c.h.b16 %v242
    %v375 = vunpack.c.l.b16 %v243
    %v376 = vunpack.c.h.b16 %v243
    %v377 = vunpack.c.l.b16 %v244
    %v378 = vunpack.c.h.b16 %v244
    %v379 = vunpack.c.l.b16 %v245
    %v380 = vunpack.c.h.b16 %v245
    %v381 = vunpack.c.l.b16 %v246
    %v382 = vunpack.c.h.b16 %v246
    %v383 = vunpack.c.l.b16 %v247
    %v384 = vunpack.c.h.b16 %v247
    %v385 = vunpack.c.l.b16 %v248
    %v386 = vunpack.c.h.b16 %v248
    %v387 = vunpack.c.l.b16 %v249
    %v388 = vunpack.c.h.b16 %v249
    %v389 = vunpack.c.l.b16 %v250
    %v390 = vunpack.c.h.b16 %v250
    %v391 = vunpack.c.l.b16 %v251
    %v392 = vunpack.c.h.b16 %v251
    %v393 = vunpack.c.l.b16 %v252
    %v394 = vunpack.c.h.b16 %v252
    %v395 = vunpack.c.l.b16 %v253
    %v396 = vunpack.c.h.b16 %v253
    %v397 = vunpack.c.l.b16 %v254
    %v398 = vunpack.c.h.b16 %v254
    %v399 = vunpack.c.l.b16 %v255
    %v400 = vunpack.c.h.b16 %v255
    %v401 = vunpack.c.l.b16 %v256
    %v402 = vunpack.c.h.b16 %v256
    %v403 = vunpack.c.l.b16 %v257
    %v404 = vunpack.c.h.b16 %v257
    %v405 = vunpack.c.l.b16 %v258
    %v406 = vunpack.c.h.b16 %v258
    %v407 = vunpack.c.l.b16 %v259
    %v408 = vunpack.c.h.b16 %v259
    %v409 = vunpack.c.l.b16 %v260
    %v410 = vunpack.c.h.b16 %v260
    %v411 = vunpack.c.l.b16 %v261
    %v412 = vunpack.c.h.b16 %v261
    %v413 = vunpack.c.l.b16 %v262
    %v414 = vunpack.c.h.b16 %v262
    %v415 = vunpack.c.l.b16 %v263
    %v416 = vunpack.c.h.b16 %v263
    %v417 = vunpack.c.l.b16 %v264
    %v418 = vunpack.c.h.b16 %v264
    %v419 = vunpack.c.l.b16 %v265
    %v420 = vunpack.c.h.b16 %v265
    %v421 = vunpack.c.l.b16 %v266
    %v422 = vunpack.c.h.b16 %v266
    %v423 = vunpack.c.l.b16 %v267
    %v424 = vunpack.c.h.b16 %v267
    %v425 = vunpack.c.l.b16 %v268
    %v426 = vunpack.c.h.b16 %v268
    %v427 = vunpack.c.l.b16 %v269
    %v428 = vunpack.c.h.b16 %v269
    %v429 = vunpack.c.l.b16 %v270
    %v430 = vunpack.c.h.b16 %v270
    %v431 = vunpack.c.l.b16 %v271
    %v432 = vunpack.c.h.b16 %v271
    %v433 = vunpack.c.l.b16 %v272
    %v434 = vunpack.c.h.b16 %v272
    %v435 = vunpack.c.l.b16 %v273
    %v436 = vunpack.c.h.b16 %v273
    %v437 = vunpack.c.l.b16 %v274
    %v438 = vunpack.c.h.b16 %v274
    %v439 = vunpack.c.l.b16 %v275
    %v440 = vunpack.c.h.b16 %v275
    %v441 = vunpack.c.l.b16 %v276
    %v442 = vunpack.c.h.b16 %v276
    %v443 = vunpack.c.l.b16 %v277
    %v444 = vunpack.c.h.b16 %v277
    %v445 = vunpack.c.l.b16 %v278
    %v446 = vunpack.c.h.b16 %v278
    %v447 = vunpack.c.l.b16 %v279
    %v448 = vunpack.c.h.b16 %v279
    %v449 = vunpack.c.l.b16 %v280
    %v450 = vunpack.c.h.b16 %v280
    %v451 = vunpack.c.l.b16 %v281
    %v452 = vunpack.c.h.b16 %v281
    %v453 = vunpack.c.l.b16 %v282
    %v454 = vunpack.c.h.b16 %v282
    %v455 = vunpack.c.l.b16 %v283
    %v456 = vunpack.c.h.b16 %v283
    %v457 = vunpack.c.l.b16 %v284
    %v458 = vunpack.c.h.b16 %v284
    %v459 = vunpack.c.l.b16 %v285
    %v460 = vunpack.c.h.b16 %v285
    %v461 = vunpack.c.l.b16 %v286
    %v462 = vunpack.c.h.b16 %v286
    %v463 = vunpack.c.l.b16 %v287
    %v464 = vunpack.c.h.b16 %v287
    %v465 = vunpack.c.l.b16 %v288
    %v466 = vunpack.c.h.b16 %v288
    %v467 = vunpack.c.l.b16 %v289
    %v468 = vunpack.c.h.b16 %v289
    %v469 = vunpack.c.l.b16 %v290
    %v470 = vunpack.c.h.b16 %v290
    %v471 = vunpack.c.l.b16 %v291
    %v472 = vunpack.c.h.b16 %v291
    %v473 = vunpack.c.l.b16 %v292
    %v474 = vunpack.c.h.b16 %v292
    %v475 = vunpack.c.l.b16 %v293
    %v476 = vunpack.c.h.b16 %v293
    %v477 = vunpack.c.l.b16 %v294
    %v478 = vunpack.c.h.b16 %v294
    %v479 = vunpack.c.l.b16 %v295
    %v480 = vunpack.c.h.b16 %v295
    %v481 = vunpack.c.l.b16 %v296
    %v482 = vunpack.c.h.b16 %v296
    %v483 = vunpack.c.l.b16 %v297
    %v484 = vunpack.c.h.b16 %v297
    %v485 = vunpack.c.l.b16 %v298
    %v486 = vunpack.c.h.b16 %v298
    %v487 = vunpack.c.l.b16 %v299
    %v488 = vunpack.c.h.b16 %v299
    %v489 = vunpack.c.l.b16 %v300
    %v490 = vunpack.c.h.b16 %v300
    %v491 = vunpack.c.l.b16 %v301
    %v492 = vunpack.c.h.b16 %v301
    %v493 = vunpack.c.l.b16 %v302
    %v494 = vunpack.c.h.b16 %v302
    %v495 = vpack.c.b16 %v375, %v367
    %v496 = vpack.c.b16 %v376, %v368
    %v497 = vpack.c.b16 %v377, %v369
    %v498 = vpack.c.b16 %v378, %v370
    %v499 = vpack.c.b16 %v379, %v371
    %v500 = vpack.c.b16 %v380, %v372
    %v501 = vpack.c.b16 %v381, %v373
    %v502 = vpack.c.b16 %v382, %v374
    %v503 = vpack.c.b16 %v391, %v383
    %v504 = vpack.c.b16 %v392, %v384
    %v505 = vpack.c.b16 %v393, %v385
    %v506 = vpack.c.b16 %v394, %v386
    %v507 = vpack.c.b16 %v395, %v387
    %v508 = vpack.c.b16 %v396, %v388
    %v509 = vpack.c.b16 %v397, %v389
    %v510 = vpack.c.b16 %v398, %v390
    %v511 = vpack.c.b16 %v407, %v399
    %v512 = vpack.c.b16 %v408, %v400
    %v513 = vpack.c.b16 %v409, %v401
    %v514 = vpack.c.b16 %v410, %v402
    %v515 = vpack.c.b16 %v411, %v403
    %v516 = vpack.c.b16 %v412, %v404
    %v517 = vpack.c.b16 %v413, %v405
    %v518 = vpack.c.b16 %v414, %v406
    %v519 = vpack.c.b16 %v423, %v415
    %v520 = vpack.c.b16 %v424, %v416
    %v521 = vpack.c.b16 %v425, %v417
    %v522 = vpack.c.b16 %v426, %v418
    %v523 = vpack.c.b16 %v427, %v419
    %v524 = vpack.c.b16 %v428, %v420
    %v525 = vpack.c.b16 %v429, %v421
    %v526 = vpack.c.b16 %v430, %v422
    %v527 = vpack.c.b16 %v439, %v431
    %v528 = vpack.c.b16 %v440, %v432
    %v529 = vpack.c.b16 %v441, %v433
    %v530 = vpack.c.b16 %v442, %v434
    %v531 = vpack.c.b16 %v443, %v435
    %v532 = vpack.c.b16 %v444, %v436
    %v533 = vpack.c.b16 %v445, %v437
    %v534 = vpack.c.b16 %v446, %v438
    %v535 = vpack.c.b16 %v455, %v447
    %v536 = vpack.c.b16 %v456, %v448
    %v537 = vpack.c.b16 %v457, %v449
    %v538 = vpack.c.b16 %v458, %v450
    %v539 = vpack.c.b16 %v459, %v451
    %v540 = vpack.c.b16 %v460, %v452
    %v541 = vpack.c.b16 %v461, %v453
    %v542 = vpack.c.b16 %v462, %v454
    %v543 = vpack.c.b16 %v471, %v463
    %v544 = vpack.c.b16 %v472, %v464
    %v545 = vpack.c.b16 %v473, %v465
    %v546 = vpack.c.b16 %v474, %v466
    %v547 = vpack.c.b16 %v475, %v467
    %v548 = vpack.c.b16 %v476, %v468
    %v549 = vpack.c.b16 %v477, %v469
    %v550 = vpack.c.b16 %v478, %v470
    %v551 = vpack.c.b16 %v487, %v479
    %v552 = vpack.c.b16 %v488, %v480
    %v553 = vpack.c.b16 %v489, %v481
    %v554 = vpack.c.b16 %v490, %v482
    %v555 = vpack.c.b16 %v491, %v483
    %v556 = vpack.c.b16 %v492, %v484
    %v557 = vpack.c.b16 %v493, %v485
    %v558 = vpack.c.b16 %v494, %v486
    %623 = vmatpush.bf16.msra.mxu0 %v551
    %624 = vmatpush.bf16.msra.mxu0 %v543
    %625 = vmatpush.bf16.msra.mxu0 %v535
    %626 = vmatpush.bf16.msra.mxu0 %v527
    %627 = vmatpush.bf16.msra.mxu0 %v519
    %628 = vmatpush.bf16.msra.mxu0 %v511
    %629 = vmatpush.bf16.msra.mxu0 %v503
    %630 = vmatpush.bf16.msra.mxu0 %v495
    %631 = vmatmul.bf16.gmra.mxu0 %v238
    %v632 = vpop.f32.mrf.mxu0
    %v633 = vadd.f32 0.0, %v632
    %v634 = vpop.f32.mrf.mxu0
    %635 = vdwg.mxu0
    %636 = vmatpush.bf16.msra.mxu0 %v552
    %637 = vmatpush.bf16.msra.mxu0 %v544
    %638 = vmatpush.bf16.msra.mxu0 %v536
    %639 = vmatpush.bf16.msra.mxu0 %v528
    %640 = vmatpush.bf16.msra.mxu0 %v520
    %641 = vmatpush.bf16.msra.mxu0 %v512
    %642 = vmatpush.bf16.msra.mxu0 %v504
    %643 = vmatpush.bf16.msra.mxu0 %v496
    %644 = vmatmul.bf16.gmra.mxu0 %v238
    %v645 = vpop.f32.mrf.mxu0
    %v646 = vadd.f32 0.0, %v645
    %v647 = vpop.f32.mrf.mxu0
    %648 = vdwg.mxu0
    %649 = vmatpush.bf16.msra.mxu0 %v553
    %650 = vmatpush.bf16.msra.mxu0 %v545
    %651 = vmatpush.bf16.msra.mxu0 %v537
    %652 = vmatpush.bf16.msra.mxu0 %v529
    %653 = vmatpush.bf16.msra.mxu0 %v521
    %654 = vmatpush.bf16.msra.mxu0 %v513
    %655 = vmatpush.bf16.msra.mxu0 %v505
    %656 = vmatpush.bf16.msra.mxu0 %v497
    %657 = vmatmul.bf16.gmra.mxu0 %v238
    %v658 = vpop.f32.mrf.mxu0
    %v659 = vadd.f32 0.0, %v658
    %v660 = vpop.f32.mrf.mxu0
    %661 = vdwg.mxu0
    %662 = vmatpush.bf16.msra.mxu0 %v554
    %663 = vmatpush.bf16.msra.mxu0 %v546
    %664 = vmatpush.bf16.msra.mxu0 %v538
    %665 = vmatpush.bf16.msra.mxu0 %v530
    %666 = vmatpush.bf16.msra.mxu0 %v522
    %667 = vmatpush.bf16.msra.mxu0 %v514
    %668 = vmatpush.bf16.msra.mxu0 %v506
    %669 = vmatpush.bf16.msra.mxu0 %v498
    %670 = vmatmul.bf16.gmra.mxu0 %v238
    %v671 = vpop.f32.mrf.mxu0
    %v672 = vadd.f32 0.0, %v671
    %v673 = vpop.f32.mrf.mxu0
    %674 = vdwg.mxu0
    %675 = vmatpush.bf16.msra.mxu0 %v555
    %676 = vmatpush.bf16.msra.mxu0 %v547
    %677 = vmatpush.bf16.msra.mxu0 %v539
    %678 = vmatpush.bf16.msra.mxu0 %v531
    %679 = vmatpush.bf16.msra.mxu0 %v523
    %680 = vmatpush.bf16.msra.mxu0 %v515
    %681 = vmatpush.bf16.msra.mxu0 %v507
    %682 = vmatpush.bf16.msra.mxu0 %v499
    %683 = vmatmul.bf16.gmra.mxu0 %v238
    %v684 = vpop.f32.mrf.mxu0
    %v685 = vadd.f32 0.0, %v684
    %v686 = vpop.f32.mrf.mxu0
    %687 = vdwg.mxu0
    %688 = vmatpush.bf16.msra.mxu0 %v556
    %689 = vmatpush.bf16.msra.mxu0 %v548
    %690 = vmatpush.bf16.msra.mxu0 %v540
    %691 = vmatpush.bf16.msra.mxu0 %v532
    %692 = vmatpush.bf16.msra.mxu0 %v524
    %693 = vmatpush.bf16.msra.mxu0 %v516
    %694 = vmatpush.bf16.msra.mxu0 %v508
    %695 = vmatpush.bf16.msra.mxu0 %v500
    %696 = vmatmul.bf16.gmra.mxu0 %v238
    %v697 = vpop.f32.mrf.mxu0
    %v698 = vadd.f32 0.0, %v697
    %v699 = vpop.f32.mrf.mxu0
    %700 = vdwg.mxu0
    %701 = vmatpush.bf16.msra.mxu0 %v557
    %702 = vmatpush.bf16.msra.mxu0 %v549
    %703 = vmatpush.bf16.msra.mxu0 %v541
    %704 = vmatpush.bf16.msra.mxu0 %v533
    %705 = vmatpush.bf16.msra.mxu0 %v525
    %706 = vmatpush.bf16.msra.mxu0 %v517
    %707 = vmatpush.bf16.msra.mxu0 %v509
    %708 = vmatpush.bf16.msra.mxu0 %v501
    %709 = vmatmul.bf16.gmra.mxu0 %v238
    %v710 = vpop.f32.mrf.mxu0
    %v711 = vadd.f32 0.0, %v710
    %v712 = vpop.f32.mrf.mxu0
    %713 = vdwg.mxu0
    %714 = vmatpush.bf16.msra.mxu0 %v558
    %715 = vmatpush.bf16.msra.mxu0 %v550
    %716 = vmatpush.bf16.msra.mxu0 %v542
    %717 = vmatpush.bf16.msra.mxu0 %v534
    %718 = vmatpush.bf16.msra.mxu0 %v526
    %719 = vmatpush.bf16.msra.mxu0 %v518
    %720 = vmatpush.bf16.msra.mxu0 %v510
    %721 = vmatpush.bf16.msra.mxu0 %v502
    %722 = vmatmul.bf16.gmra.mxu0 %v238
    %v723 = vpop.f32.mrf.mxu0
    %v724 = vadd.f32 0.0, %v723
    %v725 = vpop.f32.mrf.mxu0
    %726 = vdwg.mxu0
    %727 = vst [vmem:[#allocation10] sm:$0xff] %v633
    %728 = vst [vmem:[#allocation10 + $0x8] sm:$0xff] %v646
    %729 = vst [vmem:[#allocation10 + $0x10] sm:$0xff] %v659
    %730 = vst [vmem:[#allocation10 + $0x18] sm:$0xff] %v672
    %731 = vst [vmem:[#allocation10 + $0x20] sm:$0xff] %v685
    %732 = vst [vmem:[#allocation10 + $0x28] sm:$0xff] %v698
    %733 = vst [vmem:[#allocation10 + $0x30] sm:$0xff] %v711
    %734 = vst [vmem:[#allocation10 + $0x38] sm:$0xff] %v724
    // Predicated region
    $region46: #{tpu_custom_call.1} parent=1 // pred_check
      _
    $region47: #{tpu_custom_call.1} parent=1 // pred_check_branch
      %736 = sbr.rel (0) target = $region49
    $region48: #{tpu_custom_call.1} parent=1 // pred_region
      %738 = vsyncadd [#allocation4], 0
      %s740 = sshll.u32 [#allocation10], 4
      %s741 = int_to_ptr.vmem [resolvable:$true] %s740
      %s742 = sshll.u32 %s7, 4
      %s743 = int_to_ptr.hbm [resolvable:$true] %s742
      %745 = dma.vmem_to_hbm [thread:$0]  %s741, 1024, %s743, [#allocation4]
    $region49: #{tpu_custom_call.1} parent=1 // pred_fallthru
      _
    // Predicated region
    $region50: #{tpu_custom_call.1} parent=1 // pred_check
      _
    $region51: #{tpu_custom_call.1} parent=1 // pred_check_branch
      %747 = sbr.rel (0) target = $region53
    $region52: #{tpu_custom_call.1} parent=1 // pred_region
      %749 = dma.done [#allocation4], 1024
    $region53: #{tpu_custom_call.1} parent=1 // pred_fallthru
      _
    %750 = vsyncpa [#allocation3], 1
    %751 = vsyncpa [#allocation6], 1
    %752 = vsyncpa [#allocation9], 1
    %753 = vsyncpa [#allocation4], 1

</llo_original>
